<compile_context>
chip_gen: v6e
topology: v6e:2x2x1
jax: 0.10.0
libtpu: 0.0.40
codegen_flags: <defaults>
</compile_context>

<pallas_src>
import functools

import jax
import jax.numpy as jnp
import numpy as np
from jax.experimental import pallas as pl
from jax.experimental.pallas import tpu as pltpu

_LANES = 128
_RESYNC = 4        # recompute exact sin/cos every _RESYNC frequencies
_STRIP_ROWS = 64   # rows per in-kernel strip (keeps recurrence state in vregs)


def _round_up(a: int, b: int) -> int:
    return -(-a // b) * b


def _pos_enc_kernel(x_ref, o_ref, *, freqs, log_space, df, strip_rows):
    """Positional encoding for one lane-dense (tm, 128) tile.

    x_ref: (tm, 128) input tile.
    o_ref: (K, tm, 128), K = 1 + 2*len(freqs).
           o_ref[0] = x, o_ref[2k+1] = sin(f_k x), o_ref[2k+2] = cos(f_k x).

    The tile is processed in small row strips so the recurrence state (s, c,
    sd, cd) lives in vregs instead of full-tile VMEM temporaries.
    """
    n_freqs = len(freqs)
    tm = x_ref.shape[0]
    for r0 in range(0, tm, strip_rows):
        rl = min(strip_rows, tm - r0)
        x = x_ref[r0:r0 + rl, :].astype(jnp.float32)   # compute in f32
        o_ref[0, r0:r0 + rl, :] = x.astype(o_ref.dtype)
        if n_freqs == 0:
            continue

        if (not log_space) and n_freqs > 1:
            # Linear spacing: constant angle-addition step (2 extra EUP calls).
            phi = x * df
            sd = jnp.sin(phi)
            cd = jnp.cos(phi)

        s = c = None
        for k in range(n_freqs):
            if k % _RESYNC == 0:
                # Exact resync: bounds recurrence drift to <= _RESYNC-1 steps.
                t = x * freqs[k]
                s = jnp.sin(t)
                c = jnp.cos(t)
            elif log_space:
                # f_k = 2 f_{k-1}: double-angle identities (pure VPU work).
                s, c = 2.0 * s * c, (c - s) * (c + s)
            else:
                # f_k = f_{k-1} + df: angle addition (pure VPU work).
                s, c = s * cd + c * sd, c * cd - s * sd
            o_ref[2 * k + 1, r0:r0 + rl, :] = s.astype(o_ref.dtype)
            o_ref[2 * k + 2, r0:r0 + rl, :] = c.astype(o_ref.dtype)


def positional_encoder(x, n_freqs: int, log_space: bool = False, *,
                       block_rows: int = 512, out_dtype=None,
                       k_major: bool = False):
    """Pallas equivalent of PositionalEncoder.forward.

    x: (..., d_input) float array.
    Default: returns (..., d_input * (1 + 2*n_freqs)) in the exact PyTorch order
    [x, sin(f0 x), cos(f0 x), sin(f1 x), ...] along the last dim.
    k_major=True: returns (1 + 2*n_freqs, ..., d_input) — the kernel's native
    layout, skipping the re-interleave transpose of the expanded output
    (consumers can fold that permutation into their first weight matrix).
    out_dtype: recommended jnp.bfloat16 for bf16-tolerant consumers (halves the
    dominant writeback bytes); compute stays f32 inside the kernel.
    """
    x = jnp.asarray(x)
    out_dtype = jnp.dtype(x.dtype if out_dtype is None else out_dtype)
    *batch_shape, d_input = x.shape
    batch_shape = tuple(batch_shape)
    K = 1 + 2 * n_freqs

    # Static frequency parameters (match torch.linspace semantics).
    if n_freqs > 0:
        if log_space:
            bands = 2.0 ** np.arange(n_freqs, dtype=np.float64)
        else:
            bands = np.linspace(2.0 ** 0.0, 2.0 ** (n_freqs - 1), n_freqs)
        freqs = tuple(float(f) for f in bands)
        df = float(bands[1] - bands[0]) if n_freqs > 1 else 0.0
    else:
        freqs, df = (), 0.0

    # ---- Lane-dense flattening: (..., d_input) -> padded (rows, 128) slab ----
    total = int(x.size)
    rows = max(1, -(-total // _LANES))

    in_item = jnp.dtype(x.dtype).itemsize
    out_item = out_dtype.itemsize
    # Sublane multiple of the narrowest dtype in play (8/16/32 for 32/16/8-bit).
    sub = max(8, 32 // in_item, 32 // out_item)

    tm = max(sub, min(_round_up(block_rows, sub), _round_up(rows, sub)))
    # v7x megacore: prefer >= 2 grid steps so the "parallel" axis covers both TCs.
    if rows > sub:
        tm = min(tm, max(sub, _round_up(-(-rows // 2), sub)))

    # Double-buffered per-step footprint; keep under v5e's 16 MiB scoped default.
    def _footprint(t):
        return 2 * t * _LANES * in_item + 2 * K * t * _LANES * out_item

    budget = 12 * 1024 * 1024
    while _footprint(tm) > budget and tm > sub:
        tm = max(sub, _round_up(tm // 2, sub))

    rows_padded = _round_up(rows, tm)
    total_padded = rows_padded * _LANES

    x_flat = x.reshape(-1)
    if total_padded != total:
        x_flat = jnp.pad(x_flat, (0, total_padded - total))
    x2d = x_flat.reshape(rows_padded, _LANES)

    strip_rows = min(tm, _round_up(_STRIP_ROWS, sub))

    kernel = functools.partial(_pos_enc_kernel, freqs=freqs,
                               log_space=log_space, df=df,
                               strip_rows=strip_rows)

    n_resync = (n_freqs + _RESYNC - 1) // _RESYNC
    n_step_angle = 1 if (not log_space and n_freqs > 1) else 0
    cost = pl.CostEstimate(
        flops=int(total_padded * (2 + 8 * n_freqs)),
        transcendentals=int(total_padded * 2 * (n_resync + n_step_angle)),
        bytes_accessed=int(total_padded * (in_item + K * out_item)),
    )

    out3d = pl.pallas_call(
        kernel,
        out_shape=jax.ShapeDtypeStruct((K, rows_padded, _LANES), out_dtype),
        grid_spec=pltpu.PrefetchScalarGridSpec(
            num_scalar_prefetch=0,
            grid=(rows_padded // tm,),
            in_specs=[pl.BlockSpec((tm, _LANES), lambda i: (i, 0))],
            out_specs=pl.BlockSpec((K, tm, _LANES), lambda i: (0, i, 0)),
        ),
        compiler_params=pltpu.CompilerParams(
            dimension_semantics=("parallel",),
            vmem_limit_bytes=int(min(32 * 1024 * 1024,
                                     max(16 * 1024 * 1024, 2 * _footprint(tm)))),
        ),
        cost_estimate=cost,
    )(x2d)

    # K-major layout: zero extra passes over the expanded output.
    y = out3d.reshape(K, total_padded)[:, :total]
    y = y.reshape((K,) + batch_shape + (d_input,))
    if k_major:
        return y
    # Exact PyTorch layout: this moveaxis is a full XLA transpose of the
    # K-expanded tensor (~2x extra HBM traffic).  Prefer k_major=True and fold
    # the permutation into the consumer when possible.
    y = jnp.moveaxis(y, 0, -2)
    return y.reshape(batch_shape + (d_input * K,))


def _reference(x, n_freqs, log_space=False):
    """Pure-JAX reference mirroring the PyTorch forward exactly."""
    if log_space:
        freq_bands = 2.0 ** np.linspace(0.0, n_freqs - 1, n_freqs)
    else:
        freq_bands = np.linspace(2.0 ** 0.0, 2.0 ** (n_freqs - 1), n_freqs)
    outs = [x]
    for f in freq_bands:
        outs.append(jnp.sin(x * float(f)))
        outs.append(jnp.cos(x * float(f)))
    return jnp.concatenate(outs, axis=-1)


if __name__ == "__main__":
    key = jax.random.PRNGKey(0)
    # Small, module-consistent shapes: a batch of 64 3-D points (NeRF xyz).
    N, d_input = 64, 3
    x = jax.random.normal(key, (N, d_input), dtype=jnp.float32)

    # Linear-spaced frequencies (module default), n_freqs=4 -> d_output=27.
    n_freqs = 4
    out_lin = jax.block_until_ready(positional_encoder(x, n_freqs, log_space=False))
    ref_lin = _reference(x, n_freqs, log_space=False)
    np.testing.assert_allclose(np.asarray(out_lin), np.asarray(ref_lin),
                               rtol=1e-5, atol=2e-5)
    assert out_lin.shape == (N, d_input * (1 + 2 * n_freqs))

    # K-major fast-path layout is a pure permutation of the default output.
    out_km = jax.block_until_ready(
        positional_encoder(x, n_freqs, log_space=False, k_major=True))
    assert out_km.shape == (1 + 2 * n_freqs, N, d_input)
    np.testing.assert_allclose(
        np.asarray(jnp.moveaxis(out_km, 0, -2).reshape(N, -1)),
        np.asarray(out_lin), rtol=0, atol=0)

    # Log-spaced, realistic NeRF depth (n_freqs=10) to exercise the resync path.
    n_freqs = 10
    out_log = jax.block_until_ready(positional_encoder(x, n_freqs, log_space=True))
    ref_log = _reference(x, n_freqs, log_space=True)
    np.testing.assert_allclose(np.asarray(out_log), np.asarray(ref_log),
                               rtol=1e-5, atol=1e-4)
    assert out_log.shape == (N, d_input * (1 + 2 * n_freqs))

    # Batched input with extra leading dims.
    x3 = jax.random.normal(jax.random.PRNGKey(0), (2, 8, 3), dtype=jnp.float32)
    out_b = jax.block_until_ready(positional_encoder(x3, 3, log_space=True))
    ref_b = _reference(x3, 3, log_space=True)
    np.testing.assert_allclose(np.asarray(out_b), np.asarray(ref_b),
                               rtol=1e-5, atol=2e-5)
    assert out_b.shape == (2, 8, 3 * (1 + 2 * 3))

    print("KERNEL_OK")
</pallas_src>

<mosaic_0001>
module attributes {stable_mosaic.version = 11 : i64} {
  func.func @_pos_enc_kernel(%arg0: i32, %arg1: memref<8x128xf32, #tpu.memory_space<vmem>>, %arg2: memref<9x8x128xf32, #tpu.memory_space<vmem>>) attributes {dimension_semantics = [#tpu.dimension_semantics<parallel>], iteration_bounds = array<i64: 1>, scalar_prefetch = 0 : i64, scratch_operands = 0 : i64, tpu.core_type = #tpu.core_type<tc>, window_params = [{transform_indices = @transform_0, window_bounds = array<i64: 8, 128>}, {transform_indices = @transform_1, window_bounds = array<i64: 9, 8, 128>}]} {
    %c0 = arith.constant 0 : index
    %c0_0 = arith.constant 0 : index
    %0 = vector.load %arg1[%c0, %c0_0] : memref<8x128xf32, #tpu.memory_space<vmem>>, vector<8x128xf32>
    %c0_1 = arith.constant 0 : index
    %c0_2 = arith.constant 0 : index
    %c0_3 = arith.constant 0 : index
    %1 = vector.load %arg2[%c0_1, %c0_2, %c0_3] : memref<9x8x128xf32, #tpu.memory_space<vmem>>, vector<1x8x128xf32>
    %2 = vector.shape_cast %1 : vector<1x8x128xf32> to vector<8x128xf32>
    %3 = vector.shape_cast %0 : vector<8x128xf32> to vector<1x8x128xf32>
    tpu.vector_store %arg2[%c0_1, %c0_2, %c0_3], %3 {strides = array<i32>} : memref<9x8x128xf32, #tpu.memory_space<vmem>>, vector<1x8x128xf32>,
    %cst = arith.constant 2.33333325 : f32
    %4 = vector.broadcast %cst : f32 to vector<8x128xf32>
    %5 = arith.mulf %0, %4 : vector<8x128xf32>
    %6 = math.sin %5 : vector<8x128xf32>
    %7 = math.cos %5 : vector<8x128xf32>
    %cst_4 = arith.constant 1.000000e+00 : f32
    %8 = vector.broadcast %cst_4 : f32 to vector<8x128xf32>
    %9 = arith.mulf %0, %8 : vector<8x128xf32>
    %10 = math.sin %9 : vector<8x128xf32>
    %11 = math.cos %9 : vector<8x128xf32>
    %c1 = arith.constant 1 : index
    %c0_5 = arith.constant 0 : index
    %c0_6 = arith.constant 0 : index
    %12 = vector.load %arg2[%c1, %c0_5, %c0_6] : memref<9x8x128xf32, #tpu.memory_space<vmem>>, vector<1x8x128xf32>
    %13 = vector.shape_cast %12 : vector<1x8x128xf32> to vector<8x128xf32>
    %14 = vector.shape_cast %10 : vector<8x128xf32> to vector<1x8x128xf32>
    tpu.vector_store %arg2[%c1, %c0_5, %c0_6], %14 {strides = array<i32>} : memref<9x8x128xf32, #tpu.memory_space<vmem>>, vector<1x8x128xf32>,
    %c2 = arith.constant 2 : index
    %c0_7 = arith.constant 0 : index
    %c0_8 = arith.constant 0 : index
    %15 = vector.load %arg2[%c2, %c0_7, %c0_8] : memref<9x8x128xf32, #tpu.memory_space<vmem>>, vector<1x8x128xf32>
    %16 = vector.shape_cast %15 : vector<1x8x128xf32> to vector<8x128xf32>
    %17 = vector.shape_cast %11 : vector<8x128xf32> to vector<1x8x128xf32>
    tpu.vector_store %arg2[%c2, %c0_7, %c0_8], %17 {strides = array<i32>} : memref<9x8x128xf32, #tpu.memory_space<vmem>>, vector<1x8x128xf32>,
    %18 = arith.mulf %10, %7 : vector<8x128xf32>
    %19 = arith.mulf %11, %6 : vector<8x128xf32>
    %20 = arith.addf %18, %19 : vector<8x128xf32>
    %21 = arith.mulf %11, %7 : vector<8x128xf32>
    %22 = arith.mulf %10, %6 : vector<8x128xf32>
    %23 = arith.subf %21, %22 : vector<8x128xf32>
    %c3 = arith.constant 3 : index
    %c0_9 = arith.constant 0 : index
    %c0_10 = arith.constant 0 : index
    %24 = vector.load %arg2[%c3, %c0_9, %c0_10] : memref<9x8x128xf32, #tpu.memory_space<vmem>>, vector<1x8x128xf32>
    %25 = vector.shape_cast %24 : vector<1x8x128xf32> to vector<8x128xf32>
    %26 = vector.shape_cast %20 : vector<8x128xf32> to vector<1x8x128xf32>
    tpu.vector_store %arg2[%c3, %c0_9, %c0_10], %26 {strides = array<i32>} : memref<9x8x128xf32, #tpu.memory_space<vmem>>, vector<1x8x128xf32>,
    %c4 = arith.constant 4 : index
    %c0_11 = arith.constant 0 : index
    %c0_12 = arith.constant 0 : index
    %27 = vector.load %arg2[%c4, %c0_11, %c0_12] : memref<9x8x128xf32, #tpu.memory_space<vmem>>, vector<1x8x128xf32>
    %28 = vector.shape_cast %27 : vector<1x8x128xf32> to vector<8x128xf32>
    %29 = vector.shape_cast %23 : vector<8x128xf32> to vector<1x8x128xf32>
    tpu.vector_store %arg2[%c4, %c0_11, %c0_12], %29 {strides = array<i32>} : memref<9x8x128xf32, #tpu.memory_space<vmem>>, vector<1x8x128xf32>,
    %30 = arith.mulf %20, %7 : vector<8x128xf32>
    %31 = arith.mulf %23, %6 : vector<8x128xf32>
    %32 = arith.addf %30, %31 : vector<8x128xf32>
    %33 = arith.mulf %23, %7 : vector<8x128xf32>
    %34 = arith.mulf %20, %6 : vector<8x128xf32>
    %35 = arith.subf %33, %34 : vector<8x128xf32>
    %c5 = arith.constant 5 : index
    %c0_13 = arith.constant 0 : index
    %c0_14 = arith.constant 0 : index
    %36 = vector.load %arg2[%c5, %c0_13, %c0_14] : memref<9x8x128xf32, #tpu.memory_space<vmem>>, vector<1x8x128xf32>
    %37 = vector.shape_cast %36 : vector<1x8x128xf32> to vector<8x128xf32>
    %38 = vector.shape_cast %32 : vector<8x128xf32> to vector<1x8x128xf32>
    tpu.vector_store %arg2[%c5, %c0_13, %c0_14], %38 {strides = array<i32>} : memref<9x8x128xf32, #tpu.memory_space<vmem>>, vector<1x8x128xf32>,
    %c6 = arith.constant 6 : index
    %c0_15 = arith.constant 0 : index
    %c0_16 = arith.constant 0 : index
    %39 = vector.load %arg2[%c6, %c0_15, %c0_16] : memref<9x8x128xf32, #tpu.memory_space<vmem>>, vector<1x8x128xf32>
    %40 = vector.shape_cast %39 : vector<1x8x128xf32> to vector<8x128xf32>
    %41 = vector.shape_cast %35 : vector<8x128xf32> to vector<1x8x128xf32>
    tpu.vector_store %arg2[%c6, %c0_15, %c0_16], %41 {strides = array<i32>} : memref<9x8x128xf32, #tpu.memory_space<vmem>>, vector<1x8x128xf32>,
    %42 = arith.mulf %32, %7 : vector<8x128xf32>
    %43 = arith.mulf %35, %6 : vector<8x128xf32>
    %44 = arith.addf %42, %43 : vector<8x128xf32>
    %45 = arith.mulf %35, %7 : vector<8x128xf32>
    %46 = arith.mulf %32, %6 : vector<8x128xf32>
    %47 = arith.subf %45, %46 : vector<8x128xf32>
    %c7 = arith.constant 7 : index
    %c0_17 = arith.constant 0 : index
    %c0_18 = arith.constant 0 : index
    %48 = vector.load %arg2[%c7, %c0_17, %c0_18] : memref<9x8x128xf32, #tpu.memory_space<vmem>>, vector<1x8x128xf32>
    %49 = vector.shape_cast %48 : vector<1x8x128xf32> to vector<8x128xf32>
    %50 = vector.shape_cast %44 : vector<8x128xf32> to vector<1x8x128xf32>
    tpu.vector_store %arg2[%c7, %c0_17, %c0_18], %50 {strides = array<i32>} : memref<9x8x128xf32, #tpu.memory_space<vmem>>, vector<1x8x128xf32>,
    %c8 = arith.constant 8 : index
    %c0_19 = arith.constant 0 : index
    %c0_20 = arith.constant 0 : index
    %51 = vector.load %arg2[%c8, %c0_19, %c0_20] : memref<9x8x128xf32, #tpu.memory_space<vmem>>, vector<1x8x128xf32>
    %52 = vector.shape_cast %51 : vector<1x8x128xf32> to vector<8x128xf32>
    %53 = vector.shape_cast %47 : vector<8x128xf32> to vector<1x8x128xf32>
    tpu.vector_store %arg2[%c8, %c0_19, %c0_20], %53 {strides = array<i32>} : memref<9x8x128xf32, #tpu.memory_space<vmem>>, vector<1x8x128xf32>,
    return
  }
  func.func @transform_0(%arg0: i32) -> (i32, i32) {
    %c0_i32 = arith.constant 0 : i32
    %c0_i32_0 = arith.constant 0 : i32
    return %arg0, %c0_i32 : i32, i32
  }
  func.func @transform_1(%arg0: i32) -> (i32, i32, i32) {
    %c0_i32 = arith.constant 0 : i32
    %c0_i32_0 = arith.constant 0 : i32
    %c0_i32_1 = arith.constant 0 : i32
    return %c0_i32, %arg0, %c0_i32_0 : i32, i32, i32
  }
}

</mosaic_0001>

<llo_original>
// kernel: tpu_custom_call.1
$region0: #{tpu_custom_call.1}
  #allocation0 [shape = 'u32[]', space=smem, size = 0x4, offset = 0x4, fixed_abs, tag = 'smem constant byte address 0x4 - core index']
  #allocation1 [shape = 'u32[144,128]{1,0:T(1,128)}', space=vmem, size = 0x12000, scoped, tag = 'internal scratch']
  %s0 = inlined_call_operand.hbm [shape: f32[8,128], index: 0, kind: input, shape index: {}]
  %s1 = inlined_call_operand.hbm [shape: f32[9,8,128], index: 1, kind: output, shape index: {}]
  %s2 = sld [smem:[#allocation0]]
  $region18: #{tpu_custom_call.1} parent=0
    _
  %s4 = ssub.s32 1, %s2
  %s5 = scalar_select 0, %s4, %s2
  $region1: #{tpu_custom_call.1} parent=0
    #allocation2 [shape = 'u8[4096]{0}', space=vmem, size = 0x1000, scoped, tag = 'input window, operand 0, single buffered']
    #allocation3 [shape = 's32[1]{0}', space=sflag, size = 0x4, scoped, tag = 'scoped memory for tpu_custom_call.1']
    #allocation4 [shape = 's32[1]{0}', space=sflag, size = 0x4, scoped, tag = 'scoped memory for tpu_custom_call.1']
    #allocation5 [shape = 'u8[36864]{0}', space=vmem, size = 0x9000, scoped, tag = 'output window, operand 0, single buffered']
    %6 = vsyncpa [#allocation3], 0
    %7 = vsyncpa [#allocation4], 0
    // Predicated region
    $region2: #{tpu_custom_call.1} parent=1 // pred_check
      _
    $region3: #{tpu_custom_call.1} parent=1 // pred_check_branch
      %9 = sbr.rel (0) target = $region5
    $region4: #{tpu_custom_call.1} parent=1 // pred_region
      %s11 = ssub.s32 128, 128
      %12 = vsyncadd [#allocation3], %s11
      %s14 = sshll.u32 [#allocation2], 4
      %s15 = int_to_ptr.vmem [resolvable:$true] %s14
      %17 = dma.hbm_to_vmem [thread:$0]  %s0, 128, %s15, [#allocation3]
    $region5: #{tpu_custom_call.1} parent=1 // pred_fallthru
      _
    // Predicated region
    $region6: #{tpu_custom_call.1} parent=1 // pred_check
      _
    $region7: #{tpu_custom_call.1} parent=1 // pred_check_branch
      %19 = sbr.rel (0) target = $region9
    $region8: #{tpu_custom_call.1} parent=1 // pred_region
      %20 = dma.done [#allocation3], 128
    $region9: #{tpu_custom_call.1} parent=1 // pred_fallthru
      _
    %v21 = vld [vmem:[#allocation2] sm:$0xff]
    %22 = vst [vmem:[#allocation5] sm:$0xff] %v21
    %v23 = vmul.f32 %v21, 2.3333333
    %v24 = vand.u32 2147483647, %v23
    %vm25 = vcmp.le.f32.partialorder %v24, 0.7853982
    %vm26 = vcmp.lt.s32.totalorder %v23, 0
    %v27 = vand.u32 %v23, 2139095040
    %v28 = vshrl.u32 %v27, 23
    %v29 = vsub.s32 %v28, 127
    %v30 = vand.u32 2147483647, %v23
    %v31 = vand.u32 %v30, 8388607
    %v32 = vor.u32 %v31, 8388608
    %v33 = vsub.s32 0, %v32
    %v34 = vadd.s32 %v29, 1
    %vm35 = vcmp.gt.s32.totalorder %v34, 0
    %v36 = vsel %vm35, %v34, 0
    %v37 = vshrl.u32 %v36, 5
    %v38 = vand.u32 %v36, 31
    %v39 = vsub.s32 32, %v38
    %v40 = vshrl.u32 683565275, %v39
    %v41 = vshll.u32 683565275, %v38
    %v42 = vshrl.u32 2475754826, %v39
    %v43 = vor.u32 %v41, %v42
    %v44 = vshll.u32 2475754826, %v38
    %v45 = vshrl.u32 2131351028, %v39
    %v46 = vor.u32 %v44, %v45
    %v47 = vshll.u32 2131351028, %v38
    %v48 = vshrl.u32 2102212464, %v39
    %v49 = vor.u32 %v47, %v48
    %v50 = vshll.u32 2102212464, %v38
    %v51 = vshrl.u32 920167782, %v39
    %v52 = vor.u32 %v50, %v51
    %v53 = vshll.u32 920167782, %v38
    %v54 = vshrl.u32 1326507024, %v39
    %v55 = vor.u32 %v53, %v54
    %vm56 = vcmp.lt.s32.totalorder %v37, 1
    %vm57 = vcmp.lt.s32.totalorder %v37, 2
    %vm58 = vcmp.lt.s32.totalorder %v37, 3
    %vm59 = vcmp.lt.s32.totalorder %v37, 4
    %v60 = vsel %vm56, %v40, %v43
    %v61 = vsel %vm59, %v49, 2102212464
    %v62 = vsel %vm58, %v46, %v61
    %v63 = vsel %vm57, %v60, %v62
    %v64 = vsel %vm56, %v43, %v46
    %v65 = vsel %vm59, %v52, 920167782
    %v66 = vsel %vm58, %v49, %v65
    %v67 = vsel %vm57, %v64, %v66
    %v68 = vsel %vm56, %v46, %v49
    %v69 = vsel %vm59, %v55, 1326507024
    %v70 = vsel %vm58, %v52, %v69
    %v71 = vsel %vm57, %v68, %v70
    %v72 = vshll.u32 %v32, 8
    %v73 = vmul.u32.u64.compose %v72, %v71
    %v74 = vextract.low.u32 %v73
    %v75 = vextract.high.u32 %v73
    %v76 = vmul.u32.u64.compose %v72, %v67
    %v77 = vextract.low.u32 %v76
    %v78 = vextract.high.u32 %v76
    %v79 = vmul.u32 %v72, %v63
    %v80 = vadd.s32 %v75, %v77
    %vm81 = vc.u32 %v75, %v77
    %v82 = vadd.s32 %v78, 1
    %v83 = vsel %vm81, %v82, %v78
    %v84 = vadd.s32 %v79, %v83
    %v85 = vadd.s32 %v84, 536870912
    %v86 = vshrl.u32 %v85, 30
    %v87 = vshll.u32 %v86, 30
    %v88 = vsub.s32 %v84, %v87
    %vm89 = vcmp.lt.s32.totalorder %v88, 0
    %v90 = vsub.s32 0, %v88
    %v91 = vsel %vm89, %v90, %v88
    %v92 = vclz %v91
    %v93 = vsub.s32 %v92, 2
    %vm94 = vcmp.gt.s32.totalorder 0, %v93
    %v95 = vsel %vm94, 0, %v93
    %v96 = vsub.s32 32, %v95
    %v97 = vshll.u32 %v88, %v95
    %v98 = vshrl.u32 %v80, %v96
    %v99 = vor.u32 %v97, %v98
    %v100 = vsub.s32 4294967266, %v95
    %v101 = vadd.s32 %v100, 127
    %v102 = vshll.u32 %v101, 23
    %v103 = vor.u32 4788187, %v102
    %v104 = vand.u32 2147483647, %v103
    %v106 = vcvt.s32.f32 %v99
    %v107 = vmul.f32 %v106, %v104
    %v108 = vxor.u32 %v107, 2147483648
    %v109 = vsel %vm26, %v108, %v107
    %v110 = vsub.s32 4, %v86
    %v111 = vsel %vm26, %v110, %v86
    %v112 = vsel %vm25, %v23, %v109
    %v113 = vsel %vm25, 0, %v111
    %v114 = vcosq.f32.pop %v112
    %v115 = vsinq.f32.pop %v112
    %vm116 = vweird.f32 %v23
    %v117 = vadd.s32 %v113, 3
    %v118 = vand.u32 %v117, 3
    %vm119 = vcmp.lt.s32.totalorder %v118, 2
    %vm120 = vcmp.eq.s32.totalorder %v118, 0
    %v121 = vxor.u32 %v115, 2147483648
    %v122 = vsel %vm120, %v114, %v121
    %vm123 = vcmp.eq.s32.totalorder %v118, 2
    %v124 = vxor.u32 %v114, 2147483648
    %v125 = vsel %vm123, %v124, %v115
    %v126 = vsel %vm119, %v122, %v125
    %v127 = vsel %vm116, nan, %v126
    %v128 = vand.u32 2147483647, %v23
    %vm129 = vcmp.le.f32.partialorder %v128, 0.7853982
    %vm130 = vcmp.lt.s32.totalorder %v23, 0
    %v131 = vand.u32 %v23, 2139095040
    %v132 = vshrl.u32 %v131, 23
    %v133 = vsub.s32 %v132, 127
    %v134 = vand.u32 2147483647, %v23
    %v135 = vand.u32 %v134, 8388607
    %v136 = vor.u32 %v135, 8388608
    %v137 = vsub.s32 0, %v136
    %v138 = vadd.s32 %v133, 1
    %vm139 = vcmp.gt.s32.totalorder %v138, 0
    %v140 = vsel %vm139, %v138, 0
    %v141 = vshrl.u32 %v140, 5
    %v142 = vand.u32 %v140, 31
    %v143 = vsub.s32 32, %v142
    %v144 = vshrl.u32 683565275, %v143
    %v145 = vshll.u32 683565275, %v142
    %v146 = vshrl.u32 2475754826, %v143
    %v147 = vor.u32 %v145, %v146
    %v148 = vshll.u32 2475754826, %v142
    %v149 = vshrl.u32 2131351028, %v143
    %v150 = vor.u32 %v148, %v149
    %v151 = vshll.u32 2131351028, %v142
    %v152 = vshrl.u32 2102212464, %v143
    %v153 = vor.u32 %v151, %v152
    %v154 = vshll.u32 2102212464, %v142
    %v155 = vshrl.u32 920167782, %v143
    %v156 = vor.u32 %v154, %v155
    %v157 = vshll.u32 920167782, %v142
    %v158 = vshrl.u32 1326507024, %v143
    %v159 = vor.u32 %v157, %v158
    %vm160 = vcmp.lt.s32.totalorder %v141, 1
    %vm161 = vcmp.lt.s32.totalorder %v141, 2
    %vm162 = vcmp.lt.s32.totalorder %v141, 3
    %vm163 = vcmp.lt.s32.totalorder %v141, 4
    %v164 = vsel %vm160, %v144, %v147
    %v165 = vsel %vm163, %v153, 2102212464
    %v166 = vsel %vm162, %v150, %v165
    %v167 = vsel %vm161, %v164, %v166
    %v168 = vsel %vm160, %v147, %v150
    %v169 = vsel %vm163, %v156, 920167782
    %v170 = vsel %vm162, %v153, %v169
    %v171 = vsel %vm161, %v168, %v170
    %v172 = vsel %vm160, %v150, %v153
    %v173 = vsel %vm163, %v159, 1326507024
    %v174 = vsel %vm162, %v156, %v173
    %v175 = vsel %vm161, %v172, %v174
    %v176 = vshll.u32 %v136, 8
    %v177 = vmul.u32.u64.compose %v176, %v175
    %v178 = vextract.low.u32 %v177
    %v179 = vextract.high.u32 %v177
    %v180 = vmul.u32.u64.compose %v176, %v171
    %v181 = vextract.low.u32 %v180
    %v182 = vextract.high.u32 %v180
    %v183 = vmul.u32 %v176, %v167
    %v184 = vadd.s32 %v179, %v181
    %vm185 = vc.u32 %v179, %v181
    %v186 = vadd.s32 %v182, 1
    %v187 = vsel %vm185, %v186, %v182
    %v188 = vadd.s32 %v183, %v187
    %v189 = vadd.s32 %v188, 536870912
    %v190 = vshrl.u32 %v189, 30
    %v191 = vshll.u32 %v190, 30
    %v192 = vsub.s32 %v188, %v191
    %vm193 = vcmp.lt.s32.totalorder %v192, 0
    %v194 = vsub.s32 0, %v192
    %v195 = vsel %vm193, %v194, %v192
    %v196 = vclz %v195
    %v197 = vsub.s32 %v196, 2
    %vm198 = vcmp.gt.s32.totalorder 0, %v197
    %v199 = vsel %vm198, 0, %v197
    %v200 = vsub.s32 32, %v199
    %v201 = vshll.u32 %v192, %v199
    %v202 = vshrl.u32 %v184, %v200
    %v203 = vor.u32 %v201, %v202
    %v204 = vsub.s32 4294967266, %v199
    %v205 = vadd.s32 %v204, 127
    %v206 = vshll.u32 %v205, 23
    %v207 = vor.u32 4788187, %v206
    %v208 = vand.u32 2147483647, %v207
    %v210 = vcvt.s32.f32 %v203
    %v211 = vmul.f32 %v210, %v208
    %v212 = vxor.u32 %v211, 2147483648
    %v213 = vsel %vm130, %v212, %v211
    %v214 = vsub.s32 4, %v190
    %v215 = vsel %vm130, %v214, %v190
    %v216 = vsel %vm129, %v23, %v213
    %v217 = vsel %vm129, 0, %v215
    %v218 = vcosq.f32.pop %v216
    %v219 = vsinq.f32.pop %v216
    %vm220 = vweird.f32 %v23
    %v221 = vand.u32 %v217, 3
    %vm222 = vcmp.lt.s32.totalorder %v221, 2
    %vm223 = vcmp.eq.s32.totalorder %v221, 0
    %v224 = vxor.u32 %v219, 2147483648
    %v225 = vsel %vm223, %v218, %v224
    %vm226 = vcmp.eq.s32.totalorder %v221, 2
    %v227 = vxor.u32 %v218, 2147483648
    %v228 = vsel %vm226, %v227, %v219
    %v229 = vsel %vm222, %v225, %v228
    %v230 = vsel %vm220, nan, %v229
    %v231 = vand.u32 2147483647, %v21
    %vm232 = vcmp.le.f32.partialorder %v231, 0.7853982
    %vm233 = vcmp.lt.s32.totalorder %v21, 0
    %v234 = vand.u32 %v21, 2139095040
    %v235 = vshrl.u32 %v234, 23
    %v236 = vsub.s32 %v235, 127
    %v237 = vand.u32 2147483647, %v21
    %v238 = vand.u32 %v237, 8388607
    %v239 = vor.u32 %v238, 8388608
    %v240 = vsub.s32 0, %v239
    %v241 = vadd.s32 %v236, 1
    %vm242 = vcmp.gt.s32.totalorder %v241, 0
    %v243 = vsel %vm242, %v241, 0
    %v244 = vshrl.u32 %v243, 5
    %v245 = vand.u32 %v243, 31
    %v246 = vsub.s32 32, %v245
    %v247 = vshrl.u32 683565275, %v246
    %v248 = vshll.u32 683565275, %v245
    %v249 = vshrl.u32 2475754826, %v246
    %v250 = vor.u32 %v248, %v249
    %v251 = vshll.u32 2475754826, %v245
    %v252 = vshrl.u32 2131351028, %v246
    %v253 = vor.u32 %v251, %v252
    %v254 = vshll.u32 2131351028, %v245
    %v255 = vshrl.u32 2102212464, %v246
    %v256 = vor.u32 %v254, %v255
    %v257 = vshll.u32 2102212464, %v245
    %v258 = vshrl.u32 920167782, %v246
    %v259 = vor.u32 %v257, %v258
    %v260 = vshll.u32 920167782, %v245
    %v261 = vshrl.u32 1326507024, %v246
    %v262 = vor.u32 %v260, %v261
    %vm263 = vcmp.lt.s32.totalorder %v244, 1
    %vm264 = vcmp.lt.s32.totalorder %v244, 2
    %vm265 = vcmp.lt.s32.totalorder %v244, 3
    %vm266 = vcmp.lt.s32.totalorder %v244, 4
    %v267 = vsel %vm263, %v247, %v250
    %v268 = vsel %vm266, %v256, 2102212464
    %v269 = vsel %vm265, %v253, %v268
    %v270 = vsel %vm264, %v267, %v269
    %v271 = vsel %vm263, %v250, %v253
    %v272 = vsel %vm266, %v259, 920167782
    %v273 = vsel %vm265, %v256, %v272
    %v274 = vsel %vm264, %v271, %v273
    %v275 = vsel %vm263, %v253, %v256
    %v276 = vsel %vm266, %v262, 1326507024
    %v277 = vsel %vm265, %v259, %v276
    %v278 = vsel %vm264, %v275, %v277
    %v279 = vshll.u32 %v239, 8
    %v280 = vmul.u32.u64.compose %v279, %v278
    %v281 = vextract.low.u32 %v280
    %v282 = vextract.high.u32 %v280
    %v283 = vmul.u32.u64.compose %v279, %v274
    %v284 = vextract.low.u32 %v283
    %v285 = vextract.high.u32 %v283
    %v286 = vmul.u32 %v279, %v270
    %v287 = vadd.s32 %v282, %v284
    %vm288 = vc.u32 %v282, %v284
    %v289 = vadd.s32 %v285, 1
    %v290 = vsel %vm288, %v289, %v285
    %v291 = vadd.s32 %v286, %v290
    %v292 = vadd.s32 %v291, 536870912
    %v293 = vshrl.u32 %v292, 30
    %v294 = vshll.u32 %v293, 30
    %v295 = vsub.s32 %v291, %v294
    %vm296 = vcmp.lt.s32.totalorder %v295, 0
    %v297 = vsub.s32 0, %v295
    %v298 = vsel %vm296, %v297, %v295
    %v299 = vclz %v298
    %v300 = vsub.s32 %v299, 2
    %vm301 = vcmp.gt.s32.totalorder 0, %v300
    %v302 = vsel %vm301, 0, %v300
    %v303 = vsub.s32 32, %v302
    %v304 = vshll.u32 %v295, %v302
    %v305 = vshrl.u32 %v287, %v303
    %v306 = vor.u32 %v304, %v305
    %v307 = vsub.s32 4294967266, %v302
    %v308 = vadd.s32 %v307, 127
    %v309 = vshll.u32 %v308, 23
    %v310 = vor.u32 4788187, %v309
    %v311 = vand.u32 2147483647, %v310
    %v313 = vcvt.s32.f32 %v306
    %v314 = vmul.f32 %v313, %v311
    %v315 = vxor.u32 %v314, 2147483648
    %v316 = vsel %vm233, %v315, %v314
    %v317 = vsub.s32 4, %v293
    %v318 = vsel %vm233, %v317, %v293
    %v319 = vsel %vm232, %v21, %v316
    %v320 = vsel %vm232, 0, %v318
    %v321 = vcosq.f32.pop %v319
    %v322 = vsinq.f32.pop %v319
    %vm323 = vweird.f32 %v21
    %v324 = vadd.s32 %v320, 3
    %v325 = vand.u32 %v324, 3
    %vm326 = vcmp.lt.s32.totalorder %v325, 2
    %vm327 = vcmp.eq.s32.totalorder %v325, 0
    %v328 = vxor.u32 %v322, 2147483648
    %v329 = vsel %vm327, %v321, %v328
    %vm330 = vcmp.eq.s32.totalorder %v325, 2
    %v331 = vxor.u32 %v321, 2147483648
    %v332 = vsel %vm330, %v331, %v322
    %v333 = vsel %vm326, %v329, %v332
    %v334 = vsel %vm323, nan, %v333
    %v335 = vand.u32 2147483647, %v21
    %vm336 = vcmp.le.f32.partialorder %v335, 0.7853982
    %vm337 = vcmp.lt.s32.totalorder %v21, 0
    %v338 = vand.u32 %v21, 2139095040
    %v339 = vshrl.u32 %v338, 23
    %v340 = vsub.s32 %v339, 127
    %v341 = vand.u32 2147483647, %v21
    %v342 = vand.u32 %v341, 8388607
    %v343 = vor.u32 %v342, 8388608
    %v344 = vsub.s32 0, %v343
    %v345 = vadd.s32 %v340, 1
    %vm346 = vcmp.gt.s32.totalorder %v345, 0
    %v347 = vsel %vm346, %v345, 0
    %v348 = vshrl.u32 %v347, 5
    %v349 = vand.u32 %v347, 31
    %v350 = vsub.s32 32, %v349
    %v351 = vshrl.u32 683565275, %v350
    %v352 = vshll.u32 683565275, %v349
    %v353 = vshrl.u32 2475754826, %v350
    %v354 = vor.u32 %v352, %v353
    %v355 = vshll.u32 2475754826, %v349
    %v356 = vshrl.u32 2131351028, %v350
    %v357 = vor.u32 %v355, %v356
    %v358 = vshll.u32 2131351028, %v349
    %v359 = vshrl.u32 2102212464, %v350
    %v360 = vor.u32 %v358, %v359
    %v361 = vshll.u32 2102212464, %v349
    %v362 = vshrl.u32 920167782, %v350
    %v363 = vor.u32 %v361, %v362
    %v364 = vshll.u32 920167782, %v349
    %v365 = vshrl.u32 1326507024, %v350
    %v366 = vor.u32 %v364, %v365
    %vm367 = vcmp.lt.s32.totalorder %v348, 1
    %vm368 = vcmp.lt.s32.totalorder %v348, 2
    %vm369 = vcmp.lt.s32.totalorder %v348, 3
    %vm370 = vcmp.lt.s32.totalorder %v348, 4
    %v371 = vsel %vm367, %v351, %v354
    %v372 = vsel %vm370, %v360, 2102212464
    %v373 = vsel %vm369, %v357, %v372
    %v374 = vsel %vm368, %v371, %v373
    %v375 = vsel %vm367, %v354, %v357
    %v376 = vsel %vm370, %v363, 920167782
    %v377 = vsel %vm369, %v360, %v376
    %v378 = vsel %vm368, %v375, %v377
    %v379 = vsel %vm367, %v357, %v360
    %v380 = vsel %vm370, %v366, 1326507024
    %v381 = vsel %vm369, %v363, %v380
    %v382 = vsel %vm368, %v379, %v381
    %v383 = vshll.u32 %v343, 8
    %v384 = vmul.u32.u64.compose %v383, %v382
    %v385 = vextract.low.u32 %v384
    %v386 = vextract.high.u32 %v384
    %v387 = vmul.u32.u64.compose %v383, %v378
    %v388 = vextract.low.u32 %v387
    %v389 = vextract.high.u32 %v387
    %v390 = vmul.u32 %v383, %v374
    %v391 = vadd.s32 %v386, %v388
    %vm392 = vc.u32 %v386, %v388
    %v393 = vadd.s32 %v389, 1
    %v394 = vsel %vm392, %v393, %v389
    %v395 = vadd.s32 %v390, %v394
    %v396 = vadd.s32 %v395, 536870912
    %v397 = vshrl.u32 %v396, 30
    %v398 = vshll.u32 %v397, 30
    %v399 = vsub.s32 %v395, %v398
    %vm400 = vcmp.lt.s32.totalorder %v399, 0
    %v401 = vsub.s32 0, %v399
    %v402 = vsel %vm400, %v401, %v399
    %v403 = vclz %v402
    %v404 = vsub.s32 %v403, 2
    %vm405 = vcmp.gt.s32.totalorder 0, %v404
    %v406 = vsel %vm405, 0, %v404
    %v407 = vsub.s32 32, %v406
    %v408 = vshll.u32 %v399, %v406
    %v409 = vshrl.u32 %v391, %v407
    %v410 = vor.u32 %v408, %v409
    %v411 = vsub.s32 4294967266, %v406
    %v412 = vadd.s32 %v411, 127
    %v413 = vshll.u32 %v412, 23
    %v414 = vor.u32 4788187, %v413
    %v415 = vand.u32 2147483647, %v414
    %v417 = vcvt.s32.f32 %v410
    %v418 = vmul.f32 %v417, %v415
    %v419 = vxor.u32 %v418, 2147483648
    %v420 = vsel %vm337, %v419, %v418
    %v421 = vsub.s32 4, %v397
    %v422 = vsel %vm337, %v421, %v397
    %v423 = vsel %vm336, %v21, %v420
    %v424 = vsel %vm336, 0, %v422
    %v425 = vcosq.f32.pop %v423
    %v426 = vsinq.f32.pop %v423
    %vm427 = vweird.f32 %v21
    %v428 = vand.u32 %v424, 3
    %vm429 = vcmp.lt.s32.totalorder %v428, 2
    %vm430 = vcmp.eq.s32.totalorder %v428, 0
    %v431 = vxor.u32 %v426, 2147483648
    %v432 = vsel %vm430, %v425, %v431
    %vm433 = vcmp.eq.s32.totalorder %v428, 2
    %v434 = vxor.u32 %v425, 2147483648
    %v435 = vsel %vm433, %v434, %v426
    %v436 = vsel %vm429, %v432, %v435
    %v437 = vsel %vm427, nan, %v436
    %s438 = scalar_lea.vmem [#allocation5], 8
    %439 = vst [vmem:[%s438] sm:$0xff] %v334
    %s440 = scalar_lea.vmem [#allocation5], 16
    %441 = vst [vmem:[%s440] sm:$0xff] %v437
    %v442 = vmul.f32 %v334, %v230
    %v443 = vmul.f32 %v437, %v127
    %v444 = vadd.f32 %v442, %v443
    %v445 = vmul.f32 %v437, %v230
    %v446 = vmul.f32 %v334, %v127
    %v447 = vsub.f32 %v445, %v446
    %s448 = scalar_lea.vmem [#allocation5], 24
    %449 = vst [vmem:[%s448] sm:$0xff] %v444
    %s450 = scalar_lea.vmem [#allocation5], 32
    %451 = vst [vmem:[%s450] sm:$0xff] %v447
    %v452 = vmul.f32 %v444, %v230
    %v453 = vmul.f32 %v447, %v127
    %v454 = vadd.f32 %v452, %v453
    %v455 = vmul.f32 %v447, %v230
    %v456 = vmul.f32 %v444, %v127
    %v457 = vsub.f32 %v455, %v456
    %s458 = scalar_lea.vmem [#allocation5], 40
    %459 = vst [vmem:[%s458] sm:$0xff] %v454
    %s460 = scalar_lea.vmem [#allocation5], 48
    %461 = vst [vmem:[%s460] sm:$0xff] %v457
    %v462 = vmul.f32 %v454, %v230
    %v463 = vmul.f32 %v457, %v127
    %v464 = vadd.f32 %v462, %v463
    %v465 = vmul.f32 %v457, %v230
    %v466 = vmul.f32 %v454, %v127
    %v467 = vsub.f32 %v465, %v466
    %s468 = scalar_lea.vmem [#allocation5], 56
    %469 = vst [vmem:[%s468] sm:$0xff] %v464
    %s470 = scalar_lea.vmem [#allocation5], 64
    %471 = vst [vmem:[%s470] sm:$0xff] %v467
    // Predicated region
    $region10: #{tpu_custom_call.1} parent=1 // pred_check
      _
    $region11: #{tpu_custom_call.1} parent=1 // pred_check_branch
      %473 = sbr.rel (0) target = $region13
    $region12: #{tpu_custom_call.1} parent=1 // pred_region
      %s475 = ssub.s32 1152, 1152
      %476 = vsyncadd [#allocation4], %s475
      %s477 = sshll.u32 [#allocation5], 4
      %s478 = int_to_ptr.vmem [resolvable:$true] %s477
      %483 = dma.vmem_to_hbm [thread:$0]  %s478, 1152, %s1, [#allocation4], 128, 128, 8
    $region13: #{tpu_custom_call.1} parent=1 // pred_fallthru
      _
    // Predicated region
    $region14: #{tpu_custom_call.1} parent=1 // pred_check
      _
    $region15: #{tpu_custom_call.1} parent=1 // pred_check_branch
      %485 = sbr.rel (0) target = $region17
    $region16: #{tpu_custom_call.1} parent=1 // pred_region
      %486 = dma.done [#allocation4], 1152
    $region17: #{tpu_custom_call.1} parent=1 // pred_fallthru
      _
    %487 = vsyncpa [#allocation3], 1
    %488 = vsyncpa [#allocation4], 1

</llo_original>
